<compile_context>
chip_gen: v7x
topology: tpu7x:2x2x1
jax: 0.10.0
libtpu: 0.0.40
codegen_flags: <defaults>
</compile_context>

<pallas_src>
import math
import numpy as np
import jax
import jax.numpy as jnp
from jax import lax
from jax.experimental import pallas as pl
from jax.experimental.pallas import tpu as pltpu

LEAKY_SLOPE = 0.1
ACC_BUDGET_BYTES = 256 * 1024          # f32 accumulator / epilogue tile budget


def _vmem_limit_bytes():
    try:
        info = pltpu.get_tpu_info()
        cap = getattr(info, "vmem_capacity_bytes", None)
        if cap:
            return int(cap) * 3 // 4   # ~96 MiB on 128-MiB chips, 48 MiB on v7x
    except Exception:
        pass
    return 48 * 1024 * 1024            # safe default on every generation


VMEM_LIMIT_BYTES = _vmem_limit_bytes()
TM_MAX = 512 if VMEM_LIMIT_BYTES >= 80 * 1024 * 1024 else 256

TAPS_3x3_S1 = tuple((di, dj) for di in range(3) for dj in range(3))
TAPS_2x2 = tuple((a, b) for a in range(2) for b in range(2))


# ---------------------------------------------------------------------------
# Kernel 1: fused (lhs @ W) + bias -> LeakyReLU   (1x1 convs, stem im2col)
# ---------------------------------------------------------------------------
def _matmul_bias_leaky_kernel(p_ref, w_ref, b_ref, o_ref):
    acc = jnp.dot(p_ref[...], w_ref[...], preferred_element_type=jnp.float32)
    y = acc + b_ref[...]
    o_ref[...] = jnp.where(y >= 0.0, y, LEAKY_SLOPE * y).astype(o_ref.dtype)


def matmul_bias_leaky(lhs, w2d, bias):
    """lhs: (M, K) bf16, w2d: (K, Cout) bf16 (BN folded), bias: (1, Cout) f32."""
    M, K = lhs.shape
    Cout = w2d.shape[1]
    TN = Cout                                   # full output channels: no re-streaming
    tm = (ACC_BUDGET_BYTES // 4) // TN          # keep f32 (TM, TN) tile <= 256 KiB
    tm = max(8, min(TM_MAX, (tm // 8) * 8))
    TM = M if M <= tm else tm
    # TODO(synk): for Cout < 128 the stores are lane-masked; packing pairs of
    # rows into a (M/2, 2*Cout) output view would make them lane-dense.
    return pl.pallas_call(
        _matmul_bias_leaky_kernel,
        out_shape=jax.ShapeDtypeStruct((M, Cout), jnp.bfloat16),
        grid=(pl.cdiv(M, TM),),
        in_specs=[
            pl.BlockSpec((TM, K), lambda i: (i, 0)),     # activation / patch tile
            pl.BlockSpec((K, TN), lambda i: (0, 0)),     # weights (resident)
            pl.BlockSpec((1, TN), lambda i: (0, 0)),     # folded bias
        ],
        out_specs=pl.BlockSpec((TM, TN), lambda i: (i, 0)),
        compiler_params=pltpu.CompilerParams(
            dimension_semantics=("parallel",),
            vmem_limit_bytes=VMEM_LIMIT_BYTES),
    )(lhs, w2d, bias)


# ---------------------------------------------------------------------------
# Kernel 2: fused multi-tap stride-1 conv + bias + LeakyReLU (+ residual).
#   * 3x3/s1 convs: 9 taps, K = Cin, input = padded image row slabs.
#   * 3x3/s2 convs: 4 taps, K = 4*Cin, input = padded space-to-depth row slabs.
# ---------------------------------------------------------------------------
def _make_conv_tap_kernel(th, wo, cin, taps, has_residual):
    def kernel(x_ref, w_ref, b_ref, *rest):
        if has_residual:
            res_ref, o_ref = rest
        else:
            (o_ref,) = rest
        tn = o_ref.shape[-1]
        acc = jnp.zeros((th * wo, tn), jnp.float32)
        # TODO(synk): for Cin <= 64, lane-concat the kw column taps of a row into
        # one K=kw*Cin matmul to better feed the MXU and cut per-tap relayouts.
        for t, (a, b) in enumerate(taps):
            slab = x_ref[0, 0, pl.ds(a, th), pl.ds(b, wo), :]     # (th, wo, cin)
            acc = acc + jnp.dot(slab.reshape(th * wo, cin), w_ref[t],
                                preferred_element_type=jnp.float32)
        y = acc + b_ref[...]
        y = jnp.where(y >= 0.0, y, LEAKY_SLOPE * y)
        if has_residual:
            y = y + res_ref[0].astype(jnp.float32)                # fused shortcut
        o_ref[0] = y.astype(o_ref.dtype)
    return kernel


def _choose_conv_tiles(batch, ho, wo, cout):
    """Pick (TH, TN, n_i) so the f32 (TH*Wo, TN) accumulator stays <= 256 KiB and,
    whenever the output is row-tiled (n_i > 1), TH*Wo is a multiple of 8."""
    step = 8 // math.gcd(wo, 8)              # smallest TH with (TH*Wo) % 8 == 0
    tn = cout
    while True:
        per_row = wo * tn * 4
        if ho * per_row <= ACC_BUDGET_BYTES:
            th = ho                          # whole image fits the accumulator budget
        else:
            max_th = ACC_BUDGET_BYTES // per_row
            if max_th >= step:
                th = min((max_th // step) * step, ho)
            elif tn > 128 and tn % 2 == 0:
                tn //= 2                     # narrower channel tile instead of tiny TH
                continue
            else:
                th = min(step, ho)           # accept slightly over budget
        break
    if batch == 1 and th == ho:              # keep >=2 parallel blocks for 2-TC chips
        half = -(-ho // 2)
        half = -(-half // step) * step
        if 0 < half < ho:
            th = half
    n_i = -(-ho // th)
    return th, tn, n_i


def _stack_row_slabs(xpad, th, n_i, halo):
    """(N, HP, WP, C) padded image -> (N, n_i, th+halo, WP, C) halo'd row slabs."""
    N, HP, WP, C = xpad.shape
    need = n_i * th + halo
    if need > HP:                            # ragged last tile: pad bottom with zeros
        xpad = jnp.pad(xpad, ((0, 0), (0, need - HP), (0, 0), (0, 0)))
    if n_i == 1:
        return xpad[:, None]
    # Small H-only halo duplication ((th+halo)/th); keeps Pallas auto-pipelining
    # with bounded per-step VMEM instead of the whole padded image resident.
    return jnp.stack([xpad[:, i * th:i * th + th + halo] for i in range(n_i)], axis=1)


def _conv_taps(xpad, w_taps, bias, taps, out_hw, cout, residual=None):
    """Fused tap conv.  xpad is pre-padded so output (h, w) reads xpad[h+a, w+b]
    for every tap (a, b);  w_taps: (T, Cin_eff, Cout) bf16;  bias: (1, Cout) f32."""
    N, HP, WP, cin_eff = xpad.shape
    Ho, Wo = out_hw
    halo = max(a for a, _ in taps)
    T = len(taps)
    TH, TN, n_i = _choose_conv_tiles(N, Ho, Wo, cout)
    n_j = cout // TN
    slabs = _stack_row_slabs(xpad, TH, n_i, halo)         # (N, n_i, TH+halo, WP, C)

    in_specs = [
        pl.BlockSpec((1, 1, TH + halo, WP, cin_eff), lambda n, i, j: (n, i, 0, 0, 0)),
        pl.BlockSpec((T, cin_eff, TN), lambda n, i, j: (0, 0, j)),
        pl.BlockSpec((1, TN), lambda n, i, j: (0, j)),
    ]
    args = [slabs, w_taps, bias]
    if residual is not None:
        hp_out = n_i * TH
        res = residual
        if hp_out != Ho:
            res = jnp.pad(res, ((0, 0), (0, hp_out - Ho), (0, 0), (0, 0)))
        args.append(res.reshape(N, hp_out * Wo, cout))
        in_specs.append(pl.BlockSpec((1, TH * Wo, TN), lambda n, i, j: (n, i, j)))

    out = pl.pallas_call(
        _make_conv_tap_kernel(TH, Wo, cin_eff, taps, residual is not None),
        out_shape=jax.ShapeDtypeStruct((N, n_i * TH * Wo, cout), jnp.bfloat16),
        grid=(N, n_i, n_j),
        in_specs=in_specs,
        out_specs=pl.BlockSpec((1, TH * Wo, TN), lambda n, i, j: (n, i, j)),
        compiler_params=pltpu.CompilerParams(
            dimension_semantics=("parallel", "parallel", "parallel"),
            vmem_limit_bytes=VMEM_LIMIT_BYTES),
    )(*args)
    out = out.reshape(N, n_i * TH, Wo, cout)
    if n_i * TH != Ho:
        out = out[:, :Ho]
    return out


# ---------------------------------------------------------------------------
# Layer dispatch
# ---------------------------------------------------------------------------
def _im2col(x, k, stride, pad):
    N, H, W, C = x.shape
    xp = jnp.pad(x, ((0, 0), (pad, pad), (pad, pad), (0, 0)))
    Ho = (H + 2 * pad - k) // stride + 1
    Wo = (W + 2 * pad - k) // stride + 1
    cols = []
    for di in range(k):
        for dj in range(k):
            cols.append(xp[:, di:di + stride * (Ho - 1) + 1:stride,
                              dj:dj + stride * (Wo - 1) + 1:stride, :])
    patches = jnp.concatenate(cols, axis=-1)              # (N, Ho, Wo, k*k*C)
    return patches.reshape(N * Ho * Wo, k * k * C), (N, Ho, Wo)


def _fold_s2_weight(w_hwio):
    """(3,3,Cin,Cout) -> (4, 4*Cin, Cout) weights for the space-to-depth 2x2 conv."""
    _, _, cin, cout = w_hwio.shape

    def split(d):                      # original offset d -> (block offset, phase)
        return (0, 1) if d == 0 else ((1, 0) if d == 1 else (1, 1))

    w2 = jnp.zeros((2, 2, 4, cin, cout), w_hwio.dtype)
    for di in range(3):
        a, ph = split(di)
        for dj in range(3):
            b, pw = split(dj)
            g = ph * 2 + pw
            w2 = w2.at[a, b, g].set(w_hwio[di, dj])
    return w2.reshape(4, 4 * cin, cout)


def conv_bn_leaky(x, p, residual=None):
    k, cin, cout, stride = p["k"], p["cin"], p["cout"], p["stride"]
    N, H, W, _ = x.shape
    if k == 1:                                            # 1x1: plain matmul
        y = matmul_bias_leaky(x.reshape(N * H * W, cin), p["w_mat"], p["bias"])
        y = y.reshape(N, H, W, cout)
    elif stride == 1 and cin < 16:
        # Stem (Cin=3): K=27 im2col matmul.  The tap kernel would lane-pad Cin=3
        # to 128 in VMEM (~42x) and run K=3 tap matmuls (MXU ~1% occupied).
        patches, (n, ho, wo) = _im2col(x, 3, 1, p["pad"])
        y = matmul_bias_leaky(patches, p["w_mat"], p["bias"]).reshape(n, ho, wo, cout)
    elif stride == 1:                                     # 3x3/s1: fused tap kernel
        xp = jnp.pad(x, ((0, 0), (1, 1), (1, 1), (0, 0)))
        y = _conv_taps(xp, p["w_taps"], p["bias"], TAPS_3x3_S1, (H, W), cout,
                       residual=residual)
        residual = None
    else:                                                 # 3x3/s2: space-to-depth
        if H % 2 == 0 and W % 2 == 0:
            ho, wo = H // 2, W // 2
            s2d = x.reshape(N, ho, 2, wo, 2, cin).transpose(0, 1, 3, 2, 4, 5)
            s2d = s2d.reshape(N, ho, wo, 4 * cin)
            s2d = jnp.pad(s2d, ((0, 0), (1, 0), (1, 0), (0, 0)))   # top/left halo
            y = _conv_taps(s2d, p["w_taps"], p["bias"], TAPS_2x2, (ho, wo), cout,
                           residual=residual)
            residual = None
        else:
            # TODO(synk): odd spatial sizes fall back to im2col (never hit here).
            patches, (n, ho, wo) = _im2col(x, 3, 2, p["pad"])
            y = matmul_bias_leaky(patches, p["w_hwio"].reshape(9 * cin, cout),
                                  p["bias"]).reshape(n, ho, wo, cout)
    if residual is not None:                              # fallback (unused in DarkNet)
        y = (y.astype(jnp.float32) + residual.astype(jnp.float32)).astype(jnp.bfloat16)
    return y


# ---------------------------------------------------------------------------
# Deterministic parameter construction (synthetic weights, BN folded into W)
# ---------------------------------------------------------------------------
def make_conv(key, cin, cout, k, stride=1, eps=1e-5):
    kw_, kb, kg, kbe, km, kv = jax.random.split(key, 6)
    fan_in = k * k * cin
    w = jax.random.normal(kw_, (k, k, cin, cout), jnp.float32) / np.sqrt(fan_in)
    conv_b = 0.01 * jax.random.normal(kb, (cout,), jnp.float32)
    gamma = 1.0 + 0.1 * jax.random.normal(kg, (cout,), jnp.float32)
    beta = 0.1 * jax.random.normal(kbe, (cout,), jnp.float32)
    rmean = 0.1 * jax.random.normal(km, (cout,), jnp.float32)
    rvar = jnp.abs(jax.random.normal(kv, (cout,), jnp.float32)) + 0.5
    scale = gamma * lax.rsqrt(rvar + eps)
    # Fold BN scale into the conv weight (inference / FrozenBatchNorm semantics).
    w_folded = (w * scale).astype(jnp.bfloat16)
    bias = ((conv_b - rmean) * scale + beta).reshape(1, cout)
    p = dict(w_hwio=w_folded, bias=bias, k=k, cin=cin, cout=cout,
             stride=stride, pad=1 if k == 3 else 0)
    if k == 1:
        p["w_mat"] = w_folded.reshape(cin, cout)
    elif stride == 1 and cin < 16:
        p["w_mat"] = w_folded.reshape(9 * cin, cout)
    elif stride == 1:
        p["w_taps"] = w_folded.reshape(9, cin, cout)
    else:
        p["w_taps"] = _fold_s2_weight(w_folded)
    return p


def build_darknet53_params(key):
    # (stem convs [(cin, cout, k, stride), ...], (resblock_ch, nblocks))
    specs = [
        ([(3, 32, 3, 1), (32, 64, 3, 2)], (64, 1)),       # layer_1
        ([(64, 128, 3, 2)], (128, 2)),                    # layer_2
        ([(128, 256, 3, 2)], (256, 8)),                   # layer_3
        ([(256, 512, 3, 2)], (512, 8)),                   # layer_4
        ([(512, 1024, 3, 2)], (1024, 4)),                 # layer_5
    ]
    layers = []
    for stem, (ch, nb) in specs:
        stem_params = []
        for (ci, co, k, s) in stem:
            key, sub = jax.random.split(key)
            stem_params.append(make_conv(sub, ci, co, k, stride=s))
        blocks = []
        for _ in range(nb):
            key, k1 = jax.random.split(key)
            key, k2 = jax.random.split(key)
            blocks.append((make_conv(k1, ch, ch // 2, 1, stride=1),       # 1x1 reduce
                           make_conv(k2, ch // 2, ch, 3, stride=1)))      # 3x3 expand
        layers.append((stem_params, blocks))
    return layers


# ---------------------------------------------------------------------------
# Forward passes (Pallas version and pure-JAX reference with matching dtypes)
# ---------------------------------------------------------------------------
def darknet53_forward(x, layers):
    x = x.astype(jnp.bfloat16)
    stage_outs = []
    for stem, blocks in layers:
        for p in stem:
            x = conv_bn_leaky(x, p)
        for (p1, p2) in blocks:
            y = conv_bn_leaky(x, p1)                          # 1x1 reduce
            x = conv_bn_leaky(y, p2, residual=x)              # 3x3 expand + fused add
        stage_outs.append(x)
    return {"layer2": stage_outs[2], "layer3": stage_outs[3], "layer4": stage_outs[4]}


def _conv_ref(x, p, residual=None):
    y = lax.conv_general_dilated(
        x, p["w_hwio"], (p["stride"], p["stride"]),
        [(p["pad"], p["pad"]), (p["pad"], p["pad"])],
        dimension_numbers=("NHWC", "HWIO", "NHWC"),
        preferred_element_type=jnp.float32)
    y = y + p["bias"]
    y = jnp.where(y >= 0.0, y, LEAKY_SLOPE * y)
    if residual is not None:
        y = y + residual.astype(jnp.float32)
    return y.astype(jnp.bfloat16)


def darknet53_forward_ref(x, layers):
    x = x.astype(jnp.bfloat16)
    stage_outs = []
    for stem, blocks in layers:
        for p in stem:
            x = _conv_ref(x, p)
        for (p1, p2) in blocks:
            y = _conv_ref(x, p1)
            x = _conv_ref(y, p2, residual=x)
        stage_outs.append(x)
    return {"layer2": stage_outs[2], "layer3": stage_outs[3], "layer4": stage_outs[4]}


# ---------------------------------------------------------------------------
if __name__ == "__main__":
    key = jax.random.PRNGKey(0)
    pkey, xkey = jax.random.split(key)

    layers = build_darknet53_params(pkey)

    # Small NHWC input (PyTorch reference would be NCHW (2, 3, 32, 32)).
    x = jax.random.normal(xkey, (2, 32, 32, 3), jnp.float32)

    outs = jax.block_until_ready(darknet53_forward(x, layers))

    # Shape checks (match PyTorch DarkNet_53 strides: /8, /16, /32).
    assert outs["layer2"].shape == (2, 4, 4, 256), outs["layer2"].shape
    assert outs["layer3"].shape == (2, 2, 2, 512), outs["layer3"].shape
    assert outs["layer4"].shape == (2, 1, 1, 1024), outs["layer4"].shape

    # Numerical check against a pure-JAX reference using the same bf16 weights
    # and f32 accumulation (normalized max error).
    ref = jax.block_until_ready(darknet53_forward_ref(x, layers))
    for name in ("layer2", "layer3", "layer4"):
        o = np.asarray(outs[name].astype(jnp.float32))
        r = np.asarray(ref[name].astype(jnp.float32))
        assert np.all(np.isfinite(o)), name
        err = np.max(np.abs(o - r)) / (np.max(np.abs(r)) + 1.0)
        assert err < 3e-2, (name, err)

    print("KERNEL_OK")
</pallas_src>

<mosaic_0001>
module attributes {stable_mosaic.version = 11 : i64} {
  func.func @_matmul_bias_leaky_kernel(%arg0: i32, %arg1: memref<256x27xbf16, #tpu.memory_space<vmem>>, %arg2: memref<27x32xbf16, #tpu.memory_space<vmem>>, %arg3: memref<1x32xf32, #tpu.memory_space<vmem>>, %arg4: memref<256x32xbf16, #tpu.memory_space<vmem>>) attributes {dimension_semantics = [#tpu.dimension_semantics<parallel>], iteration_bounds = array<i64: 8>, scalar_prefetch = 0 : i64, scratch_operands = 0 : i64, tpu.core_type = #tpu.core_type<tc>, window_params = [{transform_indices = @transform_0, window_bounds = array<i64: 256, 27>}, {pipeline_mode = #tpu.pipeline_mode<synchronous>, transform_indices = @transform_1, window_bounds = array<i64: 27, 32>}, {pipeline_mode = #tpu.pipeline_mode<synchronous>, transform_indices = @transform_2, window_bounds = array<i64: 1, 32>}, {transform_indices = @transform_3, window_bounds = array<i64: 256, 32>}]} {
    %c0 = arith.constant 0 : index
    %c0_0 = arith.constant 0 : index
    %0 = vector.load %arg1[%c0, %c0_0] : memref<256x27xbf16, #tpu.memory_space<vmem>>, vector<256x27xbf16>
    %c0_1 = arith.constant 0 : index
    %c0_2 = arith.constant 0 : index
    %1 = vector.load %arg2[%c0_1, %c0_2] : memref<27x32xbf16, #tpu.memory_space<vmem>>, vector<27x32xbf16>
    %cst = arith.constant dense<0.000000e+00> : vector<256x32xf32>
    %2 = tpu.matmul %0, %1, %cst {dimension_numbers = #tpu.dot_dimension_numbers<[1], [0], [0], [1], [0, 0, 1, 1], [], []>} : vector<256x27xbf16>, vector<27x32xbf16>, vector<256x32xf32> -> vector<256x32xf32>
    %c0_3 = arith.constant 0 : index
    %c0_4 = arith.constant 0 : index
    %3 = vector.load %arg3[%c0_3, %c0_4] : memref<1x32xf32, #tpu.memory_space<vmem>>, vector<1x32xf32>
    %4 = vector.broadcast %3 : vector<1x32xf32> to vector<256x32xf32>
    %5 = arith.addf %2, %4 : vector<256x32xf32>
    %cst_5 = arith.constant 0.000000e+00 : f32
    %6 = vector.broadcast %cst_5 : f32 to vector<256x32xf32>
    %7 = arith.cmpf oge, %5, %6 : vector<256x32xf32>
    %cst_6 = arith.constant 1.000000e-01 : f32
    %8 = vector.broadcast %cst_6 : f32 to vector<256x32xf32>
    %9 = arith.mulf %8, %5 : vector<256x32xf32>
    %10 = arith.select %7, %5, %9 : vector<256x32xi1>, vector<256x32xf32>
    %11 = arith.truncf %10 : vector<256x32xf32> to vector<256x32xbf16>
    %c0_7 = arith.constant 0 : index
    %c0_8 = arith.constant 0 : index
    %12 = vector.load %arg4[%c0_7, %c0_8] : memref<256x32xbf16, #tpu.memory_space<vmem>>, vector<256x32xbf16>
    tpu.vector_store %arg4[%c0_7, %c0_8], %11 {strides = array<i32>} : memref<256x32xbf16, #tpu.memory_space<vmem>>, vector<256x32xbf16>,
    return
  }
  func.func @transform_0(%arg0: i32) -> (i32, i32) {
    %c0_i32 = arith.constant 0 : i32
    %c0_i32_0 = arith.constant 0 : i32
    return %arg0, %c0_i32 : i32, i32
  }
  func.func @transform_1(%arg0: i32) -> (i32, i32) {
    %c0_i32 = arith.constant 0 : i32
    %c0_i32_0 = arith.constant 0 : i32
    %c0_i32_1 = arith.constant 0 : i32
    return %c0_i32, %c0_i32_0 : i32, i32
  }
  func.func @transform_2(%arg0: i32) -> (i32, i32) {
    %c0_i32 = arith.constant 0 : i32
    %c0_i32_0 = arith.constant 0 : i32
    %c0_i32_1 = arith.constant 0 : i32
    return %c0_i32, %c0_i32_0 : i32, i32
  }
  func.func @transform_3(%arg0: i32) -> (i32, i32) {
    %c0_i32 = arith.constant 0 : i32
    %c0_i32_0 = arith.constant 0 : i32
    return %arg0, %c0_i32 : i32, i32
  }
}

</mosaic_0001>

<llo_original>
// kernel: tpu_custom_call.1
$region0: #{tpu_custom_call.1}
  #allocation0 [shape = 'u32[]', space=smem, size = 0x4, offset = 0x4, fixed_abs, tag = 'smem constant byte address 0x4 - core index']
  #allocation1 [shape = 'u32[144,128]{1,0:T(1,128)}', space=vmem, size = 0x12000, scoped, tag = 'internal scratch']
  %s0 = inlined_call_operand.vmem [shape: bf16[2048,27], index: 0, kind: input, shape index: {}]
  %s1 = inlined_call_operand.vmem [shape: bf16[27,32], index: 1, kind: input, shape index: {}]
  %s2 = inlined_call_operand.vmem [shape: f32[1,32], index: 2, kind: input, shape index: {}]
  %s3 = inlined_call_operand.vmem [shape: bf16[2048,32], index: 3, kind: output, shape index: {}]
  %s4 = sld [smem:[#allocation0]]
  $region45: #{tpu_custom_call.1} parent=0
    _
  %s6 = ssub.s32 1, %s4
  %s7 = scalar_select 0, %s6, %s4
  loop: start=0, step=1, limit=10
  $region2: #{tpu_custom_call.1} parent=0 // loop_pre_header
    _
  $region3: #{tpu_custom_call.1} parent=0 // loop_header
    %s9 = sphi 0, %s13
    %p10 = scmp.ge.s32.totalorder %s9, 10
    %s19 = sphi 0, %s21
    %s22 = sphi 0, %s19
    %s23 = sphi 0, %s22
    %s39 = sphi 0, %s23
    %s43 = sphi 0, %s43
    %s45 = sphi 0, %s43
    %s46 = sphi 0, %s45
    %s60 = sphi 0, %s46
    %s64 = sphi 0, %s64
    %s66 = sphi 0, %s64
    %s67 = sphi 0, %s66
    %s81 = sphi 0, %s67
    %s87 = sphi 0, %s89
    %s90 = sphi 0, %s87
    %s91 = sphi 0, %s90
    %s107 = sphi 0, %s91
  $region4: #{tpu_custom_call.1} parent=0 // loop_header_branch
    %12 = sbr.rel (%p10) target = $region8
  $region5: #{tpu_custom_call.1} parent=0 // loop_body
    %s14 = ssub.s32 %s9, 1
    %s15 = ssub.s32 %s9, 2
    %s16 = sadd.s32 %s9, 1
    %s17 = ssub.s32 %s9, %s16
    %p18 = scmp.eq.s32.totalorder %s17, 0
    %s20 = sadd.s32 %s19, 1
    %s21 = scalar_select %p18, %s19, %s20
    %p24 = pneg %p18
    %p25 = scmp.eq.s32.totalorder %s9, 7
    %p26 = por %p24, %p25
    %p27 = scmp.ne.s32.totalorder %s19, %s22
    %p28 = scmp.eq.s32.totalorder %s9, 0
    %p29 = por %p27, %p28
    %p30 = scmp.ne.s32.totalorder %s19, %s22
    %p31 = scmp.eq.s32.totalorder %s14, 7
    %p32 = por %p30, %p31
    %p33 = scmp.ne.s32.totalorder %s22, %s23
    %p34 = scmp.eq.s32.totalorder %s14, 0
    %p35 = por %p33, %p34
    %p36 = scmp.ne.s32.totalorder %s22, %s23
    %p37 = scmp.eq.s32.totalorder %s15, 7
    %p38 = por %p36, %p37
    %p40 = scmp.ne.s32.totalorder %s23, %s39
    %p41 = scmp.eq.s32.totalorder %s15, 0
    %p42 = por %p40, %p41
    %s44 = sadd.s32 %s43, 1
    %p47 = scmp.eq.s32.totalorder %s9, 7
    %p48 = scmp.ne.s32.totalorder %s43, %s45
    %p49 = scmp.eq.s32.totalorder %s9, 0
    %p50 = por %p48, %p49
    %p51 = scmp.ne.s32.totalorder %s43, %s45
    %p52 = scmp.eq.s32.totalorder %s14, 7
    %p53 = por %p51, %p52
    %p54 = scmp.ne.s32.totalorder %s45, %s46
    %p55 = scmp.eq.s32.totalorder %s14, 0
    %p56 = por %p54, %p55
    %p57 = scmp.ne.s32.totalorder %s45, %s46
    %p58 = scmp.eq.s32.totalorder %s15, 7
    %p59 = por %p57, %p58
    %p61 = scmp.ne.s32.totalorder %s46, %s60
    %p62 = scmp.eq.s32.totalorder %s15, 0
    %p63 = por %p61, %p62
    %s65 = sadd.s32 %s64, 1
    %p68 = scmp.eq.s32.totalorder %s9, 7
    %p69 = scmp.ne.s32.totalorder %s64, %s66
    %p70 = scmp.eq.s32.totalorder %s9, 0
    %p71 = por %p69, %p70
    %p72 = scmp.ne.s32.totalorder %s64, %s66
    %p73 = scmp.eq.s32.totalorder %s14, 7
    %p74 = por %p72, %p73
    %p75 = scmp.ne.s32.totalorder %s66, %s67
    %p76 = scmp.eq.s32.totalorder %s14, 0
    %p77 = por %p75, %p76
    %p78 = scmp.ne.s32.totalorder %s66, %s67
    %p79 = scmp.eq.s32.totalorder %s15, 7
    %p80 = por %p78, %p79
    %p82 = scmp.ne.s32.totalorder %s67, %s81
    %p83 = scmp.eq.s32.totalorder %s15, 0
    %p84 = por %p82, %p83
    %s85 = ssub.s32 %s9, %s16
    %p86 = scmp.eq.s32.totalorder %s85, 0
    %s88 = sadd.s32 %s87, 1
    %s89 = scalar_select %p86, %s87, %s88
    %p92 = pneg %p86
    %p93 = scmp.eq.s32.totalorder %s9, 7
    %p94 = por %p92, %p93
    %p95 = scmp.ne.s32.totalorder %s87, %s90
    %p96 = scmp.eq.s32.totalorder %s9, 0
    %p97 = por %p95, %p96
    %p98 = scmp.ne.s32.totalorder %s87, %s90
    %p99 = scmp.eq.s32.totalorder %s14, 7
    %p100 = por %p98, %p99
    %p101 = scmp.ne.s32.totalorder %s90, %s91
    %p102 = scmp.eq.s32.totalorder %s14, 0
    %p103 = por %p101, %p102
    %p104 = scmp.ne.s32.totalorder %s90, %s91
    %p105 = scmp.eq.s32.totalorder %s15, 7
    %p106 = por %p104, %p105
    %p108 = scmp.ne.s32.totalorder %s91, %s107
    %p109 = scmp.eq.s32.totalorder %s15, 0
    %p110 = por %p108, %p109
    %p111 = scmp.le.s32.totalorder 1, %s9
    %p112 = scmp.lt.s32.totalorder %s9, 9
    %p113 = pnand %p111, %p112
    %p114 = pneg %p113
    // Predicated region
    $region9: #{tpu_custom_call.1} parent=5 // pred_check
      _
    $region10: #{tpu_custom_call.1} parent=5 // pred_check_branch
      %116 = sbr.rel (%p113) target = $region12
    $region11: #{tpu_custom_call.1} parent=5 // pred_region
      %s117 = ssub.s32 %s9, 1
      // Predicated region
      $region13: #{tpu_custom_call.1} parent=11 // pred_check
        %p118 = pneg %p56
      $region14: #{tpu_custom_call.1} parent=11 // pred_check_branch
        %120 = sbr.rel (%p118) target = $region16
      $region15: #{tpu_custom_call.1} parent=11 // pred_region
        _
      $region16: #{tpu_custom_call.1} parent=11 // pred_fallthru
        _
      // Predicated region
      $region17: #{tpu_custom_call.1} parent=11 // pred_check
        %p121 = pneg %p77
      $region18: #{tpu_custom_call.1} parent=11 // pred_check_branch
        %123 = sbr.rel (%p121) target = $region20
      $region19: #{tpu_custom_call.1} parent=11 // pred_region
        _
      $region20: #{tpu_custom_call.1} parent=11 // pred_fallthru
        _
    $region12: #{tpu_custom_call.1} parent=5 // pred_fallthru
      _
    %p124 = scmp.lt.s32.totalorder %s9, 8
    // Predicated region
    $region21: #{tpu_custom_call.1} parent=5 // pred_check
      %p125 = pneg %p124
    $region22: #{tpu_custom_call.1} parent=5 // pred_check_branch
      %127 = sbr.rel (%p125) target = $region24
    $region23: #{tpu_custom_call.1} parent=5 // pred_region
      // Predicated region
      $region25: #{tpu_custom_call.1} parent=23 // pred_check
        %p128 = pneg %p29
      $region26: #{tpu_custom_call.1} parent=23 // pred_check_branch
        %130 = sbr.rel (%p128) target = $region28
      $region27: #{tpu_custom_call.1} parent=23 // pred_region
        %s131 = smul.u32 32, %s9
        %p132 = scmp.lt.s32.totalorder %s131, 255
        %s133 = scalar_select %p132, %s131, 255
        %s134 = smul.addr %s133, 4
        %s135 = scalar_lea.vmem %s0, %s134
        %s136 = smul.u32 32, %s9
      $region28: #{tpu_custom_call.1} parent=23 // pred_fallthru
        _
    $region24: #{tpu_custom_call.1} parent=5 // pred_fallthru
      _
    %p137 = scmp.le.s32.totalorder 1, %s9
    %p138 = scmp.lt.s32.totalorder %s9, 9
    %p139 = pnand %p137, %p138
    %p140 = pneg %p139
    // Predicated region
    $region29: #{tpu_custom_call.1} parent=5 // pred_check
      _
    $region30: #{tpu_custom_call.1} parent=5 // pred_check_branch
      %142 = sbr.rel (%p139) target = $region32
    $region31: #{tpu_custom_call.1} parent=5 // pred_region
      %s143 = ssub.s32 %s9, 1
      %s144 = smul.u32 32, %s14
      %p145 = scmp.lt.s32.totalorder %s144, 255
      %s146 = scalar_select %p145, %s144, 255
      %s147 = smul.addr %s146, 4
      %s148 = scalar_lea.vmem %s0, %s147
      %p149 = pneg %p35
      %p150 = pneg %p32
      %p151 = pneg %p56
      %p152 = pneg %p53
      %p153 = pneg %p77
      %p154 = pneg %p74
      %p155 = pneg %p103
      %p156 = pneg %p100
      %s157 = smul.u32 32, %s14
      %p158 = scmp.lt.s32.totalorder %s157, 255
      %s159 = scalar_select %p158, %s157, 255
      %s160 = smul.addr %s159, 4
      %s161 = scalar_lea.vmem %s3, %s160
      %s162 = smul.u32 32, %s14
      %p163 = scmp.lt.s32.totalorder %s162, 255
      %s164 = scalar_select %p163, %s162, 255
      %s165 = smul.addr %s164, 4
      %s166 = scalar_lea.vmem %s0, %s165
      %s167 = smul.u32 32, %s14
      %s168 = smul.u32 32, %s14
      %p169 = scmp.lt.s32.totalorder %s168, 255
      %s170 = scalar_select %p169, %s168, 255
      %s171 = smul.addr %s170, 4
      %s172 = scalar_lea.vmem %s3, %s171
      %s173 = smul.u32 32, %s14
      %v175 = vld [vmem:[%s166] sm:$0xf]
      %v176 = vld [vmem:[%s166 + $0x4] sm:$0xf]
      %v177 = vld [vmem:[%s166 + $0x8] sm:$0xf]
      %v178 = vld [vmem:[%s166 + $0xc] sm:$0xf]
      %v179 = vld [vmem:[%s166 + $0x10] sm:$0xf]
      %v180 = vld [vmem:[%s166 + $0x14] sm:$0xf]
      %v181 = vld [vmem:[%s166 + $0x18] sm:$0xf]
      %v182 = vld [vmem:[%s166 + $0x1c] sm:$0xf]
      %v183 = vld [vmem:[%s166 + $0x20] sm:$0xf]
      %v184 = vld [vmem:[%s166 + $0x24] sm:$0xf]
      %v185 = vld [vmem:[%s166 + $0x28] sm:$0xf]
      %v186 = vld [vmem:[%s166 + $0x2c] sm:$0xf]
      %v187 = vld [vmem:[%s166 + $0x30] sm:$0xf]
      %v188 = vld [vmem:[%s166 + $0x34] sm:$0xf]
      %v189 = vld [vmem:[%s166 + $0x38] sm:$0xf]
      %v190 = vld [vmem:[%s166 + $0x3c] sm:$0xf]
      %v191 = vld [vmem:[%s166 + $0x40] sm:$0xf]
      %v192 = vld [vmem:[%s166 + $0x44] sm:$0xf]
      %v193 = vld [vmem:[%s166 + $0x48] sm:$0xf]
      %v194 = vld [vmem:[%s166 + $0x4c] sm:$0xf]
      %v195 = vld [vmem:[%s166 + $0x50] sm:$0xf]
      %v196 = vld [vmem:[%s166 + $0x54] sm:$0xf]
      %v197 = vld [vmem:[%s166 + $0x58] sm:$0xf]
      %v198 = vld [vmem:[%s166 + $0x5c] sm:$0xf]
      %v199 = vld [vmem:[%s166 + $0x60] sm:$0xf]
      %v200 = vld [vmem:[%s166 + $0x64] sm:$0xf]
      %v201 = vld [vmem:[%s166 + $0x68] sm:$0xf]
      %v202 = vld [vmem:[%s166 + $0x6c] sm:$0xf]
      %v203 = vld [vmem:[%s166 + $0x70] sm:$0xf]
      %v204 = vld [vmem:[%s166 + $0x74] sm:$0xf]
      %v205 = vld [vmem:[%s166 + $0x78] sm:$0xf]
      %v206 = vld [vmem:[%s166 + $0x7c] sm:$0xf]
      %v207 = vld [vmem:[%s1] sm:$0xf]
      %v208 = vld [vmem:[%s1 + $0x4] sm:$0xf]
      %v209 = vld [vmem:[%s1 + $0x8] sm:$0xf]
      %v210 = vld [vmem:[%s1 + $0xc] sm:$0x3]
      %v211 = vld [vmem:[%s2] sm:$0x1]
      %v213 = vlaneseq
      %v214 = vshrl.u32 %v213, 7
      %v215 = vsub.s32 0, %v214
      %v216 = vrot.slane %v211, %v215
      %v250 = vunpack.c.l.b16 %v175
      %v251 = vunpack.c.l.b16 %v176
      %v252 = vunpack.c.l.b16 %v177
      %v253 = vunpack.c.l.b16 %v178
      %v254 = vunpack.c.l.b16 %v179
      %v255 = vunpack.c.l.b16 %v180
      %v256 = vunpack.c.l.b16 %v181
      %v257 = vunpack.c.l.b16 %v182
      %v258 = vunpack.c.l.b16 %v183
      %v259 = vunpack.c.l.b16 %v184
      %v260 = vunpack.c.l.b16 %v185
      %v261 = vunpack.c.l.b16 %v186
      %v262 = vunpack.c.l.b16 %v187
      %v263 = vunpack.c.l.b16 %v188
      %v264 = vunpack.c.l.b16 %v189
      %v265 = vunpack.c.l.b16 %v190
      %v266 = vunpack.c.l.b16 %v191
      %v267 = vunpack.c.l.b16 %v192
      %v268 = vunpack.c.l.b16 %v193
      %v269 = vunpack.c.l.b16 %v194
      %v270 = vunpack.c.l.b16 %v195
      %v271 = vunpack.c.l.b16 %v196
      %v272 = vunpack.c.l.b16 %v197
      %v273 = vunpack.c.l.b16 %v198
      %v274 = vunpack.c.l.b16 %v199
      %v275 = vunpack.c.l.b16 %v200
      %v276 = vunpack.c.l.b16 %v201
      %v277 = vunpack.c.l.b16 %v202
      %v278 = vunpack.c.l.b16 %v203
      %v279 = vunpack.c.l.b16 %v204
      %v280 = vunpack.c.l.b16 %v205
      %v281 = vunpack.c.l.b16 %v206
      %v282 = vpack.c.b16 %v251, %v250
      %v283 = vpack.c.b16 %v253, %v252
      %v284 = vpack.c.b16 %v255, %v254
      %v285 = vpack.c.b16 %v257, %v256
      %v286 = vpack.c.b16 %v259, %v258
      %v287 = vpack.c.b16 %v261, %v260
      %v288 = vpack.c.b16 %v263, %v262
      %v289 = vpack.c.b16 %v265, %v264
      %v290 = vpack.c.b16 %v267, %v266
      %v291 = vpack.c.b16 %v269, %v268
      %v292 = vpack.c.b16 %v271, %v270
      %v293 = vpack.c.b16 %v273, %v272
      %v294 = vpack.c.b16 %v275, %v274
      %v295 = vpack.c.b16 %v277, %v276
      %v296 = vpack.c.b16 %v279, %v278
      %v297 = vpack.c.b16 %v281, %v280
      %v302 = vunpack.c.l.b16 %v207
      %v303 = vunpack.c.l.b16 %v208
      %v304 = vunpack.c.l.b16 %v209
      %v305 = vunpack.c.l.b16 %v210
      %v306 = vpack.c.b16 %v303, %v302
      %v307 = vpack.c.b16 %v305, %v304
      %vm309 = vcmask 220160
      %v311 = vsel %vm309, %v282, 0
      %v314 = vsel %vm309, %v283, 0
      %v317 = vsel %vm309, %v284, 0
      %v320 = vsel %vm309, %v285, 0
      %v323 = vsel %vm309, %v286, 0
      %v326 = vsel %vm309, %v287, 0
      %v329 = vsel %vm309, %v288, 0
      %v332 = vsel %vm309, %v289, 0
      %v335 = vsel %vm309, %v290, 0
      %v338 = vsel %vm309, %v291, 0
      %v341 = vsel %vm309, %v292, 0
      %v344 = vsel %vm309, %v293, 0
      %v347 = vsel %vm309, %v294, 0
      %v350 = vsel %vm309, %v295, 0
      %v353 = vsel %vm309, %v296, 0
      %v356 = vsel %vm309, %v297, 0
      %vm358 = vcmask 1044480
      %vm359 = vcmask 1045504
      %v360 = vsel %vm358, 4294967295, 65535
      %v361 = vsel %vm359, %v360, 0
      %v363 = vand.u32 %v307, %v361
      %365 = vmatprep.subr.bf16.mxu0 0
      %366 = vmatpush1.bf16.msra.mxu0 %v306
      %367 = vmatprep.subr.bf16.mxu0 0
      %368 = vmatpush1.bf16.msra.mxu0 %v363
      %369 = vmatprep.subr.bf16.mxu0 0
      %370 = vmatpush1.bf16.msra.mxu0 0
      %371 = vmatprep.subr.bf16.mxu0 0
      %372 = vmatpush1.bf16.msra.mxu0 0
      %373 = vmatprep.subr.bf16.mxu0 0
      %374 = vmatpush1.bf16.msra.mxu0 0
      %375 = vmatprep.subr.bf16.mxu0 0
      %376 = vmatpush1.bf16.msra.mxu0 0
      %377 = vmatprep.subr.bf16.mxu0 0
      %378 = vmatpush1.bf16.msra.mxu0 0
      %379 = vmatprep.subr.bf16.mxu0 0
      %380 = vmatpush1.bf16.msra.mxu0 0
      %381 = vmatprep.subr.bf16.mxu0 0
      %382 = vmatpush1.bf16.msra.mxu0 0
      %383 = vmatprep.subr.bf16.mxu0 0
      %384 = vmatpush1.bf16.msra.mxu0 0
      %385 = vmatprep.subr.bf16.mxu0 0
      %386 = vmatpush1.bf16.msra.mxu0 0
      %387 = vmatprep.subr.bf16.mxu0 0
      %388 = vmatpush1.bf16.msra.mxu0 0
      %389 = vmatprep.subr.bf16.mxu0 0
      %390 = vmatpush1.bf16.msra.mxu0 0
      %391 = vmatprep.subr.bf16.mxu0 0
      %392 = vmatpush1.bf16.msra.mxu0 0
      %393 = vmatprep.subr.bf16.mxu0 0
      %394 = vmatpush1.bf16.msra.mxu0 0
      %395 = vmatprep.subr.bf16.mxu0 0
      %396 = vmatpush1.bf16.msra.mxu0 0
      %397 = vmatprep.mubr.bf16.mxu0 0
      %398 = vmatmul.mubr.bf16.gmra.mrb[0].mxu0 %v311
      %v399 = vpop.f32.mrb[0].mxu0
      %v400 = vadd.f32 %v216, %v399
      %v401 = vpop.f32.mrb[0].mxu0
      %v402 = vpop.f32.mrb[0].mxu0
      %v403 = vadd.f32 %v216, %v402
      %v404 = vpop.f32.mrb[0].mxu0
      %405 = vmatprep.mubr.bf16.mxu0 0
      %406 = vmatmul.mubr.bf16.gmra.mrb[0].mxu0 %v314
      %v407 = vpop.f32.mrb[0].mxu0
      %v408 = vadd.f32 %v216, %v407
      %v409 = vpop.f32.mrb[0].mxu0
      %v410 = vpop.f32.mrb[0].mxu0
      %v411 = vadd.f32 %v216, %v410
      %v412 = vpop.f32.mrb[0].mxu0
      %413 = vmatprep.mubr.bf16.mxu0 0
      %414 = vmatmul.mubr.bf16.gmra.mrb[0].mxu0 %v317
      %v415 = vpop.f32.mrb[0].mxu0
      %v416 = vadd.f32 %v216, %v415
      %v417 = vpop.f32.mrb[0].mxu0
      %v418 = vpop.f32.mrb[0].mxu0
      %v419 = vadd.f32 %v216, %v418
      %v420 = vpop.f32.mrb[0].mxu0
      %421 = vmatprep.mubr.bf16.mxu0 0
      %422 = vmatmul.mubr.bf16.gmra.mrb[0].mxu0 %v320
      %v423 = vpop.f32.mrb[0].mxu0
      %v424 = vadd.f32 %v216, %v423
      %v425 = vpop.f32.mrb[0].mxu0
      %v426 = vpop.f32.mrb[0].mxu0
      %v427 = vadd.f32 %v216, %v426
      %v428 = vpop.f32.mrb[0].mxu0
      %429 = vmatprep.mubr.bf16.mxu0 0
      %430 = vmatmul.mubr.bf16.gmra.mrb[0].mxu0 %v323
      %v431 = vpop.f32.mrb[0].mxu0
      %v432 = vadd.f32 %v216, %v431
      %v433 = vpop.f32.mrb[0].mxu0
      %v434 = vpop.f32.mrb[0].mxu0
      %v435 = vadd.f32 %v216, %v434
      %v436 = vpop.f32.mrb[0].mxu0
      %437 = vmatprep.mubr.bf16.mxu0 0
      %438 = vmatmul.mubr.bf16.gmra.mrb[0].mxu0 %v326
      %v439 = vpop.f32.mrb[0].mxu0
      %v440 = vadd.f32 %v216, %v439
      %v441 = vpop.f32.mrb[0].mxu0
      %v442 = vpop.f32.mrb[0].mxu0
      %v443 = vadd.f32 %v216, %v442
      %v444 = vpop.f32.mrb[0].mxu0
      %445 = vmatprep.mubr.bf16.mxu0 0
      %446 = vmatmul.mubr.bf16.gmra.mrb[0].mxu0 %v329
      %v447 = vpop.f32.mrb[0].mxu0
      %v448 = vadd.f32 %v216, %v447
      %v449 = vpop.f32.mrb[0].mxu0
      %v450 = vpop.f32.mrb[0].mxu0
      %v451 = vadd.f32 %v216, %v450
      %v452 = vpop.f32.mrb[0].mxu0
      %453 = vmatprep.mubr.bf16.mxu0 0
      %454 = vmatmul.mubr.bf16.gmra.mrb[0].mxu0 %v332
      %v455 = vpop.f32.mrb[0].mxu0
      %v456 = vadd.f32 %v216, %v455
      %v457 = vpop.f32.mrb[0].mxu0
      %v458 = vpop.f32.mrb[0].mxu0
      %v459 = vadd.f32 %v216, %v458
      %v460 = vpop.f32.mrb[0].mxu0
      %461 = vmatprep.mubr.bf16.mxu0 0
      %462 = vmatmul.mubr.bf16.gmra.mrb[0].mxu0 %v335
      %v463 = vpop.f32.mrb[0].mxu0
      %v464 = vadd.f32 %v216, %v463
      %v465 = vpop.f32.mrb[0].mxu0
      %v466 = vpop.f32.mrb[0].mxu0
      %v467 = vadd.f32 %v216, %v466
      %v468 = vpop.f32.mrb[0].mxu0
      %469 = vmatprep.mubr.bf16.mxu0 0
      %470 = vmatmul.mubr.bf16.gmra.mrb[0].mxu0 %v338
      %v471 = vpop.f32.mrb[0].mxu0
      %v472 = vadd.f32 %v216, %v471
      %v473 = vpop.f32.mrb[0].mxu0
      %v474 = vpop.f32.mrb[0].mxu0
      %v475 = vadd.f32 %v216, %v474
      %v476 = vpop.f32.mrb[0].mxu0
      %477 = vmatprep.mubr.bf16.mxu0 0
      %478 = vmatmul.mubr.bf16.gmra.mrb[0].mxu0 %v341
      %v479 = vpop.f32.mrb[0].mxu0
      %v480 = vadd.f32 %v216, %v479
      %v481 = vpop.f32.mrb[0].mxu0
      %v482 = vpop.f32.mrb[0].mxu0
      %v483 = vadd.f32 %v216, %v482
      %v484 = vpop.f32.mrb[0].mxu0
      %485 = vmatprep.mubr.bf16.mxu0 0
      %486 = vmatmul.mubr.bf16.gmra.mrb[0].mxu0 %v344
      %v487 = vpop.f32.mrb[0].mxu0
      %v488 = vadd.f32 %v216, %v487
      %v489 = vpop.f32.mrb[0].mxu0
      %v490 = vpop.f32.mrb[0].mxu0
      %v491 = vadd.f32 %v216, %v490
      %v492 = vpop.f32.mrb[0].mxu0
      %493 = vmatprep.mubr.bf16.mxu0 0
      %494 = vmatmul.mubr.bf16.gmra.mrb[0].mxu0 %v347
      %v495 = vpop.f32.mrb[0].mxu0
      %v496 = vadd.f32 %v216, %v495
      %v497 = vpop.f32.mrb[0].mxu0
      %v498 = vpop.f32.mrb[0].mxu0
      %v499 = vadd.f32 %v216, %v498
      %v500 = vpop.f32.mrb[0].mxu0
      %501 = vmatprep.mubr.bf16.mxu0 0
      %502 = vmatmul.mubr.bf16.gmra.mrb[0].mxu0 %v350
      %v503 = vpop.f32.mrb[0].mxu0
      %v504 = vadd.f32 %v216, %v503
      %v505 = vpop.f32.mrb[0].mxu0
      %v506 = vpop.f32.mrb[0].mxu0
      %v507 = vadd.f32 %v216, %v506
      %v508 = vpop.f32.mrb[0].mxu0
      %509 = vmatprep.mubr.bf16.mxu0 0
      %510 = vmatmul.mubr.bf16.gmra.mrb[0].mxu0 %v353
      %v511 = vpop.f32.mrb[0].mxu0
      %v512 = vadd.f32 %v216, %v511
      %v513 = vpop.f32.mrb[0].mxu0
      %v514 = vpop.f32.mrb[0].mxu0
      %v515 = vadd.f32 %v216, %v514
      %v516 = vpop.f32.mrb[0].mxu0
      %517 = vmatprep.mubr.bf16.mxu0 0
      %518 = vmatmul.mubr.bf16.gmra.mrb[0].mxu0 %v356
      %v519 = vpop.f32.mrb[0].mxu0
      %v520 = vadd.f32 %v216, %v519
      %v521 = vpop.f32.mrb[0].mxu0
      %v522 = vpop.f32.mrb[0].mxu0
      %v523 = vadd.f32 %v216, %v522
      %v524 = vpop.f32.mrb[0].mxu0
      %525 = vdwg.mxu0
      %vm526 = vcmp.ge.f32.partialorder %v400, 0.0
      %vm527 = vcmp.ge.f32.partialorder %v403, 0.0
      %vm528 = vcmp.ge.f32.partialorder %v408, 0.0
      %vm529 = vcmp.ge.f32.partialorder %v411, 0.0
      %vm530 = vcmp.ge.f32.partialorder %v416, 0.0
      %vm531 = vcmp.ge.f32.partialorder %v419, 0.0
      %vm532 = vcmp.ge.f32.partialorder %v424, 0.0
      %vm533 = vcmp.ge.f32.partialorder %v427, 0.0
      %vm534 = vcmp.ge.f32.partialorder %v432, 0.0
      %vm535 = vcmp.ge.f32.partialorder %v435, 0.0
      %vm536 = vcmp.ge.f32.partialorder %v440, 0.0
      %vm537 = vcmp.ge.f32.partialorder %v443, 0.0
      %vm538 = vcmp.ge.f32.partialorder %v448, 0.0
      %vm539 = vcmp.ge.f32.partialorder %v451, 0.0
      %vm540 = vcmp.ge.f32.partialorder %v456, 0.0
      %vm541 = vcmp.ge.f32.partialorder %v459, 0.0
      %vm542 = vcmp.ge.f32.partialorder %v464, 0.0
      %vm543 = vcmp.ge.f32.partialorder %v467, 0.0
      %vm544 = vcmp.ge.f32.partialorder %v472, 0.0
      %vm545 = vcmp.ge.f32.partialorder %v475, 0.0
      %vm546 = vcmp.ge.f32.partialorder %v480, 0.0
      %vm547 = vcmp.ge.f32.partialorder %v483, 0.0
      %vm548 = vcmp.ge.f32.partialorder %v488, 0.0
      %vm549 = vcmp.ge.f32.partialorder %v491, 0.0
      %vm550 = vcmp.ge.f32.partialorder %v496, 0.0
      %vm551 = vcmp.ge.f32.partialorder %v499, 0.0
      %vm552 = vcmp.ge.f32.partialorder %v504, 0.0
      %vm553 = vcmp.ge.f32.partialorder %v507, 0.0
      %vm554 = vcmp.ge.f32.partialorder %v512, 0.0
      %vm555 = vcmp.ge.f32.partialorder %v515, 0.0
      %vm556 = vcmp.ge.f32.partialorder %v520, 0.0
      %vm557 = vcmp.ge.f32.partialorder %v523, 0.0
      %v558 = vmul.f32 %v400, 0.1
      %v559 = vmul.f32 %v403, 0.1
      %v560 = vmul.f32 %v408, 0.1
      %v561 = vmul.f32 %v411, 0.1
      %v562 = vmul.f32 %v416, 0.1
      %v563 = vmul.f32 %v419, 0.1
      %v564 = vmul.f32 %v424, 0.1
      %v565 = vmul.f32 %v427, 0.1
      %v566 = vmul.f32 %v432, 0.1
      %v567 = vmul.f32 %v435, 0.1
      %v568 = vmul.f32 %v440, 0.1
      %v569 = vmul.f32 %v443, 0.1
      %v570 = vmul.f32 %v448, 0.1
      %v571 = vmul.f32 %v451, 0.1
      %v572 = vmul.f32 %v456, 0.1
      %v573 = vmul.f32 %v459, 0.1
      %v574 = vmul.f32 %v464, 0.1
      %v575 = vmul.f32 %v467, 0.1
      %v576 = vmul.f32 %v472, 0.1
      %v577 = vmul.f32 %v475, 0.1
      %v578 = vmul.f32 %v480, 0.1
      %v579 = vmul.f32 %v483, 0.1
      %v580 = vmul.f32 %v488, 0.1
      %v581 = vmul.f32 %v491, 0.1
      %v582 = vmul.f32 %v496, 0.1
      %v583 = vmul.f32 %v499, 0.1
      %v584 = vmul.f32 %v504, 0.1
      %v585 = vmul.f32 %v507, 0.1
      %v586 = vmul.f32 %v512, 0.1
      %v587 = vmul.f32 %v515, 0.1
      %v588 = vmul.f32 %v520, 0.1
      %v589 = vmul.f32 %v523, 0.1
      %v590 = vsel %vm526, %v400, %v558
      %v591 = vsel %vm527, %v403, %v559
      %v592 = vsel %vm528, %v408, %v560
      %v593 = vsel %vm529, %v411, %v561
      %v594 = vsel %vm530, %v416, %v562
      %v595 = vsel %vm531, %v419, %v563
      %v596 = vsel %vm532, %v424, %v564
      %v597 = vsel %vm533, %v427, %v565
      %v598 = vsel %vm534, %v432, %v566
      %v599 = vsel %vm535, %v435, %v567
      %v600 = vsel %vm536, %v440, %v568
      %v601 = vsel %vm537, %v443, %v569
      %v602 = vsel %vm538, %v448, %v570
      %v603 = vsel %vm539, %v451, %v571
      %v604 = vsel %vm540, %v456, %v572
      %v605 = vsel %vm541, %v459, %v573
      %v606 = vsel %vm542, %v464, %v574
      %v607 = vsel %vm543, %v467, %v575
      %v608 = vsel %vm544, %v472, %v576
      %v609 = vsel %vm545, %v475, %v577
      %v610 = vsel %vm546, %v480, %v578
      %v611 = vsel %vm547, %v483, %v579
      %v612 = vsel %vm548, %v488, %v580
      %v613 = vsel %vm549, %v491, %v581
      %v614 = vsel %vm550, %v496, %v582
      %v615 = vsel %vm551, %v499, %v583
      %v616 = vsel %vm552, %v504, %v584
      %v617 = vsel %vm553, %v507, %v585
      %v618 = vsel %vm554, %v512, %v586
      %v619 = vsel %vm555, %v515, %v587
      %v620 = vsel %vm556, %v520, %v588
      %v621 = vsel %vm557, %v523, %v589
      %v622 = vpack.c.bf16 %v591, %v590
      %v623 = vpack.c.bf16 %v593, %v592
      %v624 = vpack.c.bf16 %v595, %v594
      %v625 = vpack.c.bf16 %v597, %v596
      %v626 = vpack.c.bf16 %v599, %v598
      %v627 = vpack.c.bf16 %v601, %v600
      %v628 = vpack.c.bf16 %v603, %v602
      %v629 = vpack.c.bf16 %v605, %v604
      %v630 = vpack.c.bf16 %v607, %v606
      %v631 = vpack.c.bf16 %v609, %v608
      %v632 = vpack.c.bf16 %v611, %v610
      %v633 = vpack.c.bf16 %v613, %v612
      %v634 = vpack.c.bf16 %v615, %v614
      %v635 = vpack.c.bf16 %v617, %v616
      %v636 = vpack.c.bf16 %v619, %v618
      %v637 = vpack.c.bf16 %v621, %v620
      %v654 = vunpack.c.l.b16 %v622
      %v655 = vunpack.c.h.b16 %v622
      %v656 = vunpack.c.l.b16 %v623
      %v657 = vunpack.c.h.b16 %v623
      %v658 = vunpack.c.l.b16 %v624
      %v659 = vunpack.c.h.b16 %v624
      %v660 = vunpack.c.l.b16 %v625
      %v661 = vunpack.c.h.b16 %v625
      %v662 = vunpack.c.l.b16 %v626
      %v663 = vunpack.c.h.b16 %v626
      %v664 = vunpack.c.l.b16 %v627
      %v665 = vunpack.c.h.b16 %v627
      %v666 = vunpack.c.l.b16 %v628
      %v667 = vunpack.c.h.b16 %v628
      %v668 = vunpack.c.l.b16 %v629
      %v669 = vunpack.c.h.b16 %v629
      %v670 = vunpack.c.l.b16 %v630
      %v671 = vunpack.c.h.b16 %v630
      %v672 = vunpack.c.l.b16 %v631
      %v673 = vunpack.c.h.b16 %v631
      %v674 = vunpack.c.l.b16 %v632
      %v675 = vunpack.c.h.b16 %v632
      %v676 = vunpack.c.l.b16 %v633
      %v677 = vunpack.c.h.b16 %v633
      %v678 = vunpack.c.l.b16 %v634
      %v679 = vunpack.c.h.b16 %v634
      %v680 = vunpack.c.l.b16 %v635
      %v681 = vunpack.c.h.b16 %v635
      %v682 = vunpack.c.l.b16 %v636
      %v683 = vunpack.c.h.b16 %v636
      %v684 = vunpack.c.l.b16 %v637
      %v685 = vunpack.c.h.b16 %v637
      %v686 = vpack.c.b16 %v654, %v654
      %v687 = vpack.c.b16 %v655, %v655
      %v688 = vpack.c.b16 %v656, %v656
      %v689 = vpack.c.b16 %v657, %v657
      %v690 = vpack.c.b16 %v658, %v658
      %v691 = vpack.c.b16 %v659, %v659
      %v692 = vpack.c.b16 %v660, %v660
      %v693 = vpack.c.b16 %v661, %v661
      %v694 = vpack.c.b16 %v662, %v662
      %v695 = vpack.c.b16 %v663, %v663
      %v696 = vpack.c.b16 %v664, %v664
      %v697 = vpack.c.b16 %v665, %v665
      %v698 = vpack.c.b16 %v666, %v666
      %v699 = vpack.c.b16 %v667, %v667
      %v700 = vpack.c.b16 %v668, %v668
      %v701 = vpack.c.b16 %v669, %v669
      %v702 = vpack.c.b16 %v670, %v670
      %v703 = vpack.c.b16 %v671, %v671
      %v704 = vpack.c.b16 %v672, %v672
      %v705 = vpack.c.b16 %v673, %v673
      %v706 = vpack.c.b16 %v674, %v674
      %v707 = vpack.c.b16 %v675, %v675
      %v708 = vpack.c.b16 %v676, %v676
      %v709 = vpack.c.b16 %v677, %v677
      %v710 = vpack.c.b16 %v678, %v678
      %v711 = vpack.c.b16 %v679, %v679
      %v712 = vpack.c.b16 %v680, %v680
      %v713 = vpack.c.b16 %v681, %v681
      %v714 = vpack.c.b16 %v682, %v682
      %v715 = vpack.c.b16 %v683, %v683
      %v716 = vpack.c.b16 %v684, %v684
      %v717 = vpack.c.b16 %v685, %v685
      %vm750 = vcmask 257024
      %751 = vst.msk [vmem:[%s172] sm:$0xf] %vm750, %v686
      %752 = vst.msk [vmem:[%s172 + $0x4] sm:$0xf] %vm750, %v687
      %753 = vst.msk [vmem:[%s172 + $0x8] sm:$0xf] %vm750, %v688
      %754 = vst.msk [vmem:[%s172 + $0xc] sm:$0xf] %vm750, %v689
      %755 = vst.msk [vmem:[%s172 + $0x10] sm:$0xf] %vm750, %v690
      %756 = vst.msk [vmem:[%s172 + $0x14] sm:$0xf] %vm750, %v691
      %757 = vst.msk [vmem:[%s172 + $0x18] sm:$0xf] %vm750, %v692
      %758 = vst.msk [vmem:[%s172 + $0x1c] sm:$0xf] %vm750, %v693
      %759 = vst.msk [vmem:[%s172 + $0x20] sm:$0xf] %vm750, %v694
      %760 = vst.msk [vmem:[%s172 + $0x24] sm:$0xf] %vm750, %v695
      %761 = vst.msk [vmem:[%s172 + $0x28] sm:$0xf] %vm750, %v696
      %762 = vst.msk [vmem:[%s172 + $0x2c] sm:$0xf] %vm750, %v697
      %763 = vst.msk [vmem:[%s172 + $0x30] sm:$0xf] %vm750, %v698
      %764 = vst.msk [vmem:[%s172 + $0x34] sm:$0xf] %vm750, %v699
      %765 = vst.msk [vmem:[%s172 + $0x38] sm:$0xf] %vm750, %v700
      %766 = vst.msk [vmem:[%s172 + $0x3c] sm:$0xf] %vm750, %v701
      %767 = vst.msk [vmem:[%s172 + $0x40] sm:$0xf] %vm750, %v702
      %768 = vst.msk [vmem:[%s172 + $0x44] sm:$0xf] %vm750, %v703
      %769 = vst.msk [vmem:[%s172 + $0x48] sm:$0xf] %vm750, %v704
      %770 = vst.msk [vmem:[%s172 + $0x4c] sm:$0xf] %vm750, %v705
      %771 = vst.msk [vmem:[%s172 + $0x50] sm:$0xf] %vm750, %v706
      %772 = vst.msk [vmem:[%s172 + $0x54] sm:$0xf] %vm750, %v707
      %773 = vst.msk [vmem:[%s172 + $0x58] sm:$0xf] %vm750, %v708
      %774 = vst.msk [vmem:[%s172 + $0x5c] sm:$0xf] %vm750, %v709
      %775 = vst.msk [vmem:[%s172 + $0x60] sm:$0xf] %vm750, %v710
      %776 = vst.msk [vmem:[%s172 + $0x64] sm:$0xf] %vm750, %v711
      %777 = vst.msk [vmem:[%s172 + $0x68] sm:$0xf] %vm750, %v712
      %778 = vst.msk [vmem:[%s172 + $0x6c] sm:$0xf] %vm750, %v713
      %779 = vst.msk [vmem:[%s172 + $0x70] sm:$0xf] %vm750, %v714
      %780 = vst.msk [vmem:[%s172 + $0x74] sm:$0xf] %vm750, %v715
      %781 = vst.msk [vmem:[%s172 + $0x78] sm:$0xf] %vm750, %v716
      %782 = vst.msk [vmem:[%s172 + $0x7c] sm:$0xf] %vm750, %v717
      %s783 = smul.u32 32, %s14
      %p784 = scmp.lt.s32.totalorder %s783, 255
      %s785 = scalar_select %p784, %s783, 255
      %s786 = smul.addr %s785, 4
      %s787 = scalar_lea.vmem %s3, %s786
      // Predicated region
      $region33: #{tpu_custom_call.1} parent=31 // pred_check
        %p788 = pneg %p100
      $region34: #{tpu_custom_call.1} parent=31 // pred_check_branch
        %790 = sbr.rel (%p788) target = $region36
      $region35: #{tpu_custom_call.1} parent=31 // pred_region
        %s791 = smul.u32 32, %s14
      $region36: #{tpu_custom_call.1} parent=31 // pred_fallthru
        _
    $region32: #{tpu_custom_call.1} parent=5 // pred_fallthru
      _
    %p792 = scmp.le.s32.totalorder 2, %s9
    // Predicated region
    $region37: #{tpu_custom_call.1} parent=5 // pred_check
      %p793 = pneg %p792
    $region38: #{tpu_custom_call.1} parent=5 // pred_check_branch
      %795 = sbr.rel (%p793) target = $region40
    $region39: #{tpu_custom_call.1} parent=5 // pred_region
      %s796 = ssub.s32 %s9, 2
      // Predicated region
      $region41: #{tpu_custom_call.1} parent=39 // pred_check
        %p797 = pneg %p106
      $region42: #{tpu_custom_call.1} parent=39 // pred_check_branch
        %799 = sbr.rel (%p797) target = $region44
      $region43: #{tpu_custom_call.1} parent=39 // pred_region
        %s800 = smul.u32 32, %s15
        %p801 = scmp.lt.s32.totalorder %s800, 255
        %s802 = scalar_select %p801, %s800, 255
        %s803 = smul.addr %s802, 4
        %s804 = scalar_lea.vmem %s3, %s803
      $region44: #{tpu_custom_call.1} parent=39 // pred_fallthru
        _
    $region40: #{tpu_custom_call.1} parent=5 // pred_fallthru
      _
  $region6: #{tpu_custom_call.1} parent=0 // loop_footer
    %s13 = sadd.s32 1, %s9
  $region7: #{tpu_custom_call.1} parent=0 // loop_footer_branch
    %8 = sbr.rel target = $region3
  $region8: #{tpu_custom_call.1} parent=0 // loop_exit
    _

</llo_original>
